<compile_context>
chip_gen: v7x
topology: tpu7x:2x2x1
jax: 0.10.0
libtpu: 0.0.40
codegen_flags: <defaults>
</compile_context>

<pallas_src>
import math
from typing import NamedTuple

import jax
import jax.numpy as jnp
from jax.experimental import pallas as pl
from jax.experimental.pallas import tpu as pltpu

_VMEM_LIMIT_BYTES = 48 * 1024 * 1024          # safe on v5e/v6e (128 MiB) and v7x (64 MiB)
_DEFAULT_VMEM_BUDGET = 40 * 1024 * 1024       # tile-fitting budget (< scoped limit)


def _round_up(x, m):
    return ((x + m - 1) // m) * m


# --------------------------------------------------------------------------
# Kernels
# --------------------------------------------------------------------------
def _linear_kernel_single_k(x_ref, w_ref, b_ref, o_ref):
    # Whole-K block: no accumulator scratch, no init/finalize phases.
    o_ref[...] = (
        jnp.dot(x_ref[...], w_ref[...], preferred_element_type=jnp.float32)
        + b_ref[...]
    ).astype(o_ref.dtype)


def _linear_kernel_multi_k(x_ref, w_ref, b_ref, o_ref, acc_ref):
    # K-reduction over grid axis 2 with an f32 VMEM accumulator.
    k = pl.program_id(2)

    @pl.when(k == 0)
    def _init():
        acc_ref[...] = jnp.zeros_like(acc_ref)

    acc_ref[...] += jnp.dot(
        x_ref[...], w_ref[...], preferred_element_type=jnp.float32
    )

    @pl.when(k == pl.num_programs(2) - 1)
    def _finalize():
        # Bias add + cast once per output tile, in f32 (v5e-friendly).
        o_ref[...] = (acc_ref[...] + b_ref[...]).astype(o_ref.dtype)


# --------------------------------------------------------------------------
# Parameter preparation (done ONCE, outside the forward path)
# --------------------------------------------------------------------------
class LinearParams(NamedTuple):
    weight_padded: jax.Array   # (K_pad, N_pad) in compute_dtype
    bias_padded: jax.Array     # (1, N_pad) f32
    dim_in: int
    num_classes: int
    tk: int
    tn: int
    tm_cap: int
    compute_dtype: jnp.dtype


def _fit_tiles(tm, K_target, N_target, out_itemsize, compute_itemsize, budget):
    """Pick (tk, tn): whole-K / whole-N (or N/2 for v7x megacore) if the
    double-buffered VMEM estimate fits `budget`, otherwise shrink."""
    tk, tn = K_target, N_target
    # Split N in two when cleanly divisible so the 'parallel' N axis has two
    # blocks (both v7x TensorCores stream weights concurrently); each weight
    # column block is still fetched exactly once, so this is ~free on 1-TC chips.
    if N_target >= 256 and (N_target // 128) % 2 == 0:
        tn = N_target // 2

    def vmem_bytes(tk_, tn_):
        nk = pl.cdiv(K_target, tk_)
        b = 2 * (tm * tk_ + tk_ * tn_) * compute_itemsize   # double-buffered inputs
        b += 2 * tm * tn_ * out_itemsize                    # double-buffered output
        b += 2 * tn_ * 4                                    # bias (f32)
        if nk > 1:
            b += tm * tn_ * 4                               # f32 accumulator scratch
        return b

    while vmem_bytes(tk, tn) > budget and tk > 128:
        tk = _round_up(tk // 2, 128)
    while vmem_bytes(tk, tn) > budget and tn > 128:
        tn = _round_up(tn // 2, 128)
    return tk, tn


def prepare_linear_params(
    weight_t,
    bias,
    *,
    max_batch_tile=512,
    compute_dtype=jnp.bfloat16,
    out_itemsize=4,
    vmem_budget_bytes=_DEFAULT_VMEM_BUDGET,
):
    """Pad + cast the nn.Linear parameters once (tile-aligned, lane-dense).

    weight_t: (dim_in, num_classes) -- transposed PyTorch nn.Linear weight.
    bias:     (num_classes,) or (1, num_classes).
    Note: compute_dtype=bfloat16 is an intentional precision choice (f32 MXU
    accumulation); pass compute_dtype=jnp.float32 for exact f32 parity.
    """
    D, C = weight_t.shape
    K_target = _round_up(D, 128)
    N_target = _round_up(C, 128)
    tm_cap = _round_up(min(max_batch_tile, 512), 16)

    compute_itemsize = jnp.dtype(compute_dtype).itemsize
    tk, tn = _fit_tiles(
        tm_cap, K_target, N_target, out_itemsize, compute_itemsize, vmem_budget_bytes
    )
    K_pad = _round_up(K_target, tk)
    N_pad = _round_up(N_target, tn)

    w_p = (
        jnp.zeros((K_pad, N_pad), compute_dtype)
        .at[:D, :C]
        .set(weight_t.astype(compute_dtype))
    )
    b_p = (
        jnp.zeros((1, N_pad), jnp.float32)
        .at[:, :C]
        .set(jnp.reshape(bias, (1, C)).astype(jnp.float32))
    )
    return LinearParams(w_p, b_p, D, C, tk, tn, tm_cap, jnp.dtype(compute_dtype))


# --------------------------------------------------------------------------
# Forward
# --------------------------------------------------------------------------
def sup_ce_resnet_forward(
    x,
    params: LinearParams,
    *,
    allow_xla_fallback=True,
    tiny_flops_threshold=1 << 22,   # ~4 MFLOP: below this, Pallas launch is pure overhead
):
    """Pallas implementation of SupCeResNet.forward: returns [x @ W^T + b]."""
    B, D = x.shape
    assert D == params.dim_in, (D, params.dim_in)
    C = params.num_classes
    out_dtype = x.dtype
    K_pad, N_pad = params.weight_padded.shape

    # Tiny-head early exit (e.g. literal MNIST 8x64x10): let XLA fuse the dot.
    if allow_xla_fallback and 2 * B * D * C <= tiny_flops_threshold:
        x_c = x.astype(params.compute_dtype)
        if D != K_pad:
            x_c = jnp.pad(x_c, ((0, 0), (0, K_pad - D)))
        y = (
            jnp.dot(x_c, params.weight_padded, preferred_element_type=jnp.float32)
            + params.bias_padded
        )[:, :C].astype(out_dtype)
        return [y]

    tk, tn = params.tk, params.tn
    tm = _round_up(B, 16) if B <= params.tm_cap else params.tm_cap
    M_pad = _round_up(B, tm)
    nk = K_pad // tk

    # Activations: cast to compute dtype; pad only when actually needed.
    x_c = x.astype(params.compute_dtype)
    if (M_pad, K_pad) != (B, D):
        x_p = jnp.zeros((M_pad, K_pad), params.compute_dtype).at[:B, :D].set(x_c)
    else:
        x_p = x_c

    cost = pl.CostEstimate(
        flops=2 * M_pad * N_pad * K_pad,
        transcendentals=0,
        bytes_accessed=(
            x_p.size * x_p.dtype.itemsize
            + params.weight_padded.size * params.weight_padded.dtype.itemsize
            + params.bias_padded.size * params.bias_padded.dtype.itemsize
            + M_pad * N_pad * jnp.dtype(out_dtype).itemsize
        ),
    )

    if nk == 1:
        y_pad = pl.pallas_call(
            _linear_kernel_single_k,
            out_shape=jax.ShapeDtypeStruct((M_pad, N_pad), out_dtype),
            grid=(M_pad // tm, N_pad // tn),
            in_specs=[
                pl.BlockSpec((tm, tk), lambda i, j: (i, 0)),
                pl.BlockSpec((tk, tn), lambda i, j: (0, j)),
                pl.BlockSpec((1, tn), lambda i, j: (0, j)),
            ],
            out_specs=pl.BlockSpec((tm, tn), lambda i, j: (i, j)),
            compiler_params=pltpu.CompilerParams(
                dimension_semantics=("parallel", "parallel"),
                vmem_limit_bytes=_VMEM_LIMIT_BYTES,
            ),
            cost_estimate=cost,
        )(x_p, params.weight_padded, params.bias_padded)
    else:
        y_pad = pl.pallas_call(
            _linear_kernel_multi_k,
            out_shape=jax.ShapeDtypeStruct((M_pad, N_pad), out_dtype),
            grid=(M_pad // tm, N_pad // tn, nk),
            in_specs=[
                pl.BlockSpec((tm, tk), lambda i, j, k: (i, k)),
                pl.BlockSpec((tk, tn), lambda i, j, k: (k, j)),
                pl.BlockSpec((1, tn), lambda i, j, k: (0, j)),
            ],
            out_specs=pl.BlockSpec((tm, tn), lambda i, j, k: (i, j)),
            scratch_shapes=[pltpu.VMEM((tm, tn), jnp.float32)],
            compiler_params=pltpu.CompilerParams(
                dimension_semantics=("parallel", "parallel", "arbitrary"),
                vmem_limit_bytes=_VMEM_LIMIT_BYTES,
            ),
            cost_estimate=cost,
        )(x_p, params.weight_padded, params.bias_padded)

    y = y_pad[:B, :C] if (M_pad, N_pad) != (B, C) else y_pad
    return [y]  # matches PyTorch: forward returns [y]


# --------------------------------------------------------------------------
# PyTorch-equivalent init
# --------------------------------------------------------------------------
def init_raw_params(key, dim_in, num_classes, dtype=jnp.float32):
    """Init matching nn.Linear default (uniform +-1/sqrt(dim_in)).
    PyTorch weight is (C, D); we store it transposed as (D, C)."""
    k_w, k_b = jax.random.split(key)
    bound = 1.0 / math.sqrt(dim_in)
    weight_t = jax.random.uniform(
        k_w, (dim_in, num_classes), dtype=dtype, minval=-bound, maxval=bound
    )
    bias = jax.random.uniform(
        k_b, (num_classes,), dtype=dtype, minval=-bound, maxval=bound
    )
    return weight_t, bias


if __name__ == "__main__":
    key = jax.random.PRNGKey(0)

    def reference(x, weight_t, bias):
        # Same bf16 operand rounding, f32 accumulation as the kernel.
        return (
            jnp.dot(
                x.astype(jnp.bfloat16),
                weight_t.astype(jnp.bfloat16),
                preferred_element_type=jnp.float32,
            )
            + bias[None, :]
        )

    # (batch, dim_in, num_classes, allow_xla_fallback, vmem_budget_override)
    cases = [
        # Literal SupCeResNet('MNIST', 18) head -- tiny: XLA fallback path.
        (8, 64, 10, True, None),
        # Same tiny head, forced through the Pallas single-K kernel.
        (8, 64, 10, False, None),
        # ImageNet-50-ish head: whole-K, N split in 2 (Pallas single-K kernel).
        (64, 2048, 1000, False, None),
        # Same head with a tight VMEM budget to exercise the multi-K kernel.
        (64, 2048, 1000, False, 4 * 1024 * 1024),
    ]

    for (batch, dim_in, num_classes, fallback, budget) in cases:
        key, k_x, k_p = jax.random.split(key, 3)
        x = jax.random.normal(k_x, (batch, dim_in), dtype=jnp.float32)
        weight_t, bias = init_raw_params(k_p, dim_in, num_classes)

        prep_kwargs = dict(max_batch_tile=max(batch, 16))
        if budget is not None:
            prep_kwargs["vmem_budget_bytes"] = budget
        params = prepare_linear_params(weight_t, bias, **prep_kwargs)

        out_list = sup_ce_resnet_forward(x, params, allow_xla_fallback=fallback)
        y = jax.block_until_ready(out_list[0])

        y_ref = reference(x, weight_t, bias)
        assert y.shape == (batch, num_classes), (y.shape, (batch, num_classes))
        err = float(jnp.max(jnp.abs(y - y_ref)))
        assert jnp.allclose(y, y_ref, atol=2e-2, rtol=2e-2), err

    print("KERNEL_OK")
</pallas_src>

<mosaic_0001>
module attributes {stable_mosaic.version = 11 : i64} {
  func.func @_linear_kernel_single_k(%arg0: i32, %arg1: i32, %arg2: memref<16x128xbf16, #tpu.memory_space<vmem>>, %arg3: memref<128x128xbf16, #tpu.memory_space<vmem>>, %arg4: memref<1x128xf32, #tpu.memory_space<vmem>>, %arg5: memref<16x128xf32, #tpu.memory_space<vmem>>) attributes {dimension_semantics = [#tpu.dimension_semantics<parallel>, #tpu.dimension_semantics<parallel>], iteration_bounds = array<i64: 1, 1>, scalar_prefetch = 0 : i64, scratch_operands = 0 : i64, tpu.core_type = #tpu.core_type<tc>, window_params = [{transform_indices = @transform_0, window_bounds = array<i64: 16, 128>}, {transform_indices = @transform_1, window_bounds = array<i64: 128, 128>}, {transform_indices = @transform_2, window_bounds = array<i64: 1, 128>}, {transform_indices = @transform_3, window_bounds = array<i64: 16, 128>}]} {
    %c0 = arith.constant 0 : index
    %c0_0 = arith.constant 0 : index
    %0 = vector.load %arg2[%c0, %c0_0] : memref<16x128xbf16, #tpu.memory_space<vmem>>, vector<16x128xbf16>
    %c0_1 = arith.constant 0 : index
    %c0_2 = arith.constant 0 : index
    %1 = vector.load %arg3[%c0_1, %c0_2] : memref<128x128xbf16, #tpu.memory_space<vmem>>, vector<128x128xbf16>
    %cst = arith.constant dense<0.000000e+00> : vector<16x128xf32>
    %2 = tpu.matmul %0, %1, %cst {dimension_numbers = #tpu.dot_dimension_numbers<[1], [0], [0], [1], [0, 0, 1, 1], [], []>} : vector<16x128xbf16>, vector<128x128xbf16>, vector<16x128xf32> -> vector<16x128xf32>
    %c0_3 = arith.constant 0 : index
    %c0_4 = arith.constant 0 : index
    %3 = vector.load %arg4[%c0_3, %c0_4] : memref<1x128xf32, #tpu.memory_space<vmem>>, vector<1x128xf32>
    %4 = vector.broadcast %3 : vector<1x128xf32> to vector<16x128xf32>
    %5 = arith.addf %2, %4 : vector<16x128xf32>
    %c0_5 = arith.constant 0 : index
    %c0_6 = arith.constant 0 : index
    %6 = vector.load %arg5[%c0_5, %c0_6] : memref<16x128xf32, #tpu.memory_space<vmem>>, vector<16x128xf32>
    tpu.vector_store %arg5[%c0_5, %c0_6], %5 {strides = array<i32>} : memref<16x128xf32, #tpu.memory_space<vmem>>, vector<16x128xf32>,
    return
  }
  func.func @transform_0(%arg0: i32, %arg1: i32) -> (i32, i32) {
    %c0_i32 = arith.constant 0 : i32
    %c0_i32_0 = arith.constant 0 : i32
    return %arg0, %c0_i32 : i32, i32
  }
  func.func @transform_1(%arg0: i32, %arg1: i32) -> (i32, i32) {
    %c0_i32 = arith.constant 0 : i32
    %c0_i32_0 = arith.constant 0 : i32
    return %c0_i32, %arg1 : i32, i32
  }
  func.func @transform_2(%arg0: i32, %arg1: i32) -> (i32, i32) {
    %c0_i32 = arith.constant 0 : i32
    %c0_i32_0 = arith.constant 0 : i32
    return %c0_i32, %arg1 : i32, i32
  }
  func.func @transform_3(%arg0: i32, %arg1: i32) -> (i32, i32) {
    %c0_i32 = arith.constant 0 : i32
    return %arg0, %arg1 : i32, i32
  }
}

</mosaic_0001>

<llo_original>
// kernel: tpu_custom_call.1
$region0: #{tpu_custom_call.1}
  #allocation0 [shape = 'u32[]', space=smem, size = 0x4, offset = 0x4, fixed_abs, tag = 'smem constant byte address 0x4 - core index']
  #allocation1 [shape = 'u32[144,128]{1,0:T(1,128)}', space=vmem, size = 0x12000, scoped, tag = 'internal scratch']
  %s0 = inlined_call_operand.hbm [shape: bf16[16,128], index: 0, kind: input, shape index: {}]
  %s1 = inlined_call_operand.hbm [shape: bf16[128,128], index: 1, kind: input, shape index: {}]
  %s2 = inlined_call_operand.vmem [shape: f32[1,128], index: 2, kind: input, shape index: {}]
  %s3 = inlined_call_operand.hbm [shape: f32[16,128], index: 3, kind: output, shape index: {}]
  %s4 = sld [smem:[#allocation0]]
  $region30: #{tpu_custom_call.1} parent=0
    _
  %s6 = ssub.s32 1, %s4
  %s7 = scalar_select 0, %s6, %s4
  $region1: #{tpu_custom_call.1} parent=0
    #allocation2 [shape = 'u8[4096]{0}', space=vmem, size = 0x1000, scoped, tag = 'input window, operand 0, single buffered']
    #allocation3 [shape = 's32[1]{0}', space=sflag, size = 0x4, scoped, tag = 'scoped memory for tpu_custom_call.1']
    #allocation4 [shape = 's32[1]{0}', space=sflag, size = 0x4, scoped, tag = 'scoped memory for tpu_custom_call.1']
    #allocation5 [shape = 'u8[32768]{0}', space=vmem, size = 0x8000, scoped, tag = 'input window, operand 1, single buffered']
    #allocation6 [shape = 's32[1]{0}', space=sflag, size = 0x4, scoped, tag = 'scoped memory for tpu_custom_call.1']
    #allocation7 [shape = 'u8[8192]{0}', space=vmem, size = 0x2000, scoped, tag = 'output window, operand 0, single buffered']
    %8 = vsyncpa [#allocation3], 0
    %9 = vsyncpa [#allocation6], 0
    %10 = vsyncpa [#allocation4], 0
    // Predicated region
    $region2: #{tpu_custom_call.1} parent=1 // pred_check
      _
    $region3: #{tpu_custom_call.1} parent=1 // pred_check_branch
      %12 = sbr.rel (0) target = $region5
    $region4: #{tpu_custom_call.1} parent=1 // pred_region
      %s14 = ssub.s32 128, 128
      %15 = vsyncadd [#allocation3], %s14
      %s16 = sshll.u32 [#allocation2], 4
      %s17 = int_to_ptr.vmem [resolvable:$true] %s16
      %22 = dma.hbm_to_vmem [thread:$0]  %s0, 128, %s17, [#allocation3], 64, 64, 4
    $region5: #{tpu_custom_call.1} parent=1 // pred_fallthru
      _
    // Predicated region
    $region6: #{tpu_custom_call.1} parent=1 // pred_check
      _
    $region7: #{tpu_custom_call.1} parent=1 // pred_check_branch
      %24 = sbr.rel (0) target = $region9
    $region8: #{tpu_custom_call.1} parent=1 // pred_region
      %s26 = ssub.s32 1024, 1024
      %27 = vsyncadd [#allocation6], %s26
      %s28 = sshll.u32 [#allocation5], 4
      %s29 = int_to_ptr.vmem [resolvable:$true] %s28
      %34 = dma.hbm_to_vmem [thread:$0]  %s1, 1024, %s29, [#allocation6], 64, 64, 4
    $region9: #{tpu_custom_call.1} parent=1 // pred_fallthru
      _
    // Predicated region
    $region10: #{tpu_custom_call.1} parent=1 // pred_check
      _
    $region11: #{tpu_custom_call.1} parent=1 // pred_check_branch
      %36 = sbr.rel (0) target = $region13
    $region12: #{tpu_custom_call.1} parent=1 // pred_region
      _
    $region13: #{tpu_custom_call.1} parent=1 // pred_fallthru
      _
    // Predicated region
    $region14: #{tpu_custom_call.1} parent=1 // pred_check
      _
    $region15: #{tpu_custom_call.1} parent=1 // pred_check_branch
      %38 = sbr.rel (0) target = $region17
    $region16: #{tpu_custom_call.1} parent=1 // pred_region
      %39 = dma.done [#allocation3], 128
    $region17: #{tpu_custom_call.1} parent=1 // pred_fallthru
      _
    // Predicated region
    $region18: #{tpu_custom_call.1} parent=1 // pred_check
      _
    $region19: #{tpu_custom_call.1} parent=1 // pred_check_branch
      %41 = sbr.rel (0) target = $region21
    $region20: #{tpu_custom_call.1} parent=1 // pred_region
      %42 = dma.done [#allocation6], 1024
    $region21: #{tpu_custom_call.1} parent=1 // pred_fallthru
      _
    %v44 = vld [vmem:[#allocation2] sm:$0xf]
    %v45 = vld [vmem:[#allocation2 + $0x4] sm:$0xf]
    %v46 = vld [vmem:[#allocation5] sm:$0xf]
    %v47 = vld [vmem:[#allocation5 + $0x4] sm:$0xf]
    %v48 = vld [vmem:[#allocation5 + $0x8] sm:$0xf]
    %v49 = vld [vmem:[#allocation5 + $0xc] sm:$0xf]
    %v50 = vld [vmem:[#allocation5 + $0x10] sm:$0xf]
    %v51 = vld [vmem:[#allocation5 + $0x14] sm:$0xf]
    %v52 = vld [vmem:[#allocation5 + $0x18] sm:$0xf]
    %v53 = vld [vmem:[#allocation5 + $0x1c] sm:$0xf]
    %v54 = vld [vmem:[#allocation5 + $0x20] sm:$0xf]
    %v55 = vld [vmem:[#allocation5 + $0x24] sm:$0xf]
    %v56 = vld [vmem:[#allocation5 + $0x28] sm:$0xf]
    %v57 = vld [vmem:[#allocation5 + $0x2c] sm:$0xf]
    %v58 = vld [vmem:[#allocation5 + $0x30] sm:$0xf]
    %v59 = vld [vmem:[#allocation5 + $0x34] sm:$0xf]
    %v60 = vld [vmem:[#allocation5 + $0x38] sm:$0xf]
    %v61 = vld [vmem:[#allocation5 + $0x3c] sm:$0xf]
    %v62 = vld [vmem:[%s2] sm:$0x1]
    %v64 = vlaneseq
    %v65 = vshrl.u32 %v64, 7
    %v66 = vsub.s32 0, %v65
    %v67 = vrot.slane %v62, %v66
    %v71 = vunpack.c.l.b16 %v44
    %v72 = vunpack.c.l.b16 %v45
    %v73 = vpack.c.b16 %v72, %v71
    %v91 = vunpack.c.l.b16 %v46
    %v92 = vunpack.c.l.b16 %v47
    %v93 = vunpack.c.l.b16 %v48
    %v94 = vunpack.c.l.b16 %v49
    %v95 = vunpack.c.l.b16 %v50
    %v96 = vunpack.c.l.b16 %v51
    %v97 = vunpack.c.l.b16 %v52
    %v98 = vunpack.c.l.b16 %v53
    %v99 = vunpack.c.l.b16 %v54
    %v100 = vunpack.c.l.b16 %v55
    %v101 = vunpack.c.l.b16 %v56
    %v102 = vunpack.c.l.b16 %v57
    %v103 = vunpack.c.l.b16 %v58
    %v104 = vunpack.c.l.b16 %v59
    %v105 = vunpack.c.l.b16 %v60
    %v106 = vunpack.c.l.b16 %v61
    %v107 = vpack.c.b16 %v92, %v91
    %v108 = vpack.c.b16 %v94, %v93
    %v109 = vpack.c.b16 %v96, %v95
    %v110 = vpack.c.b16 %v98, %v97
    %v111 = vpack.c.b16 %v100, %v99
    %v112 = vpack.c.b16 %v102, %v101
    %v113 = vpack.c.b16 %v104, %v103
    %v114 = vpack.c.b16 %v106, %v105
    %123 = vmatprep.subr.bf16.mxu0 0
    %124 = vmatpush1.bf16.msra.mxu0 %v107
    %125 = vmatprep.subr.bf16.mxu0 0
    %126 = vmatpush1.bf16.msra.mxu0 %v108
    %127 = vmatprep.subr.bf16.mxu0 0
    %128 = vmatpush1.bf16.msra.mxu0 %v109
    %129 = vmatprep.subr.bf16.mxu0 0
    %130 = vmatpush1.bf16.msra.mxu0 %v110
    %131 = vmatprep.subr.bf16.mxu0 0
    %132 = vmatpush1.bf16.msra.mxu0 %v111
    %133 = vmatprep.subr.bf16.mxu0 0
    %134 = vmatpush1.bf16.msra.mxu0 %v112
    %135 = vmatprep.subr.bf16.mxu0 0
    %136 = vmatpush1.bf16.msra.mxu0 %v113
    %137 = vmatprep.subr.bf16.mxu0 0
    %138 = vmatpush1.bf16.msra.mxu0 %v114
    %139 = vmatprep.subr.bf16.mxu0 0
    %140 = vmatpush1.bf16.msra.mxu0 0
    %141 = vmatprep.subr.bf16.mxu0 0
    %142 = vmatpush1.bf16.msra.mxu0 0
    %143 = vmatprep.subr.bf16.mxu0 0
    %144 = vmatpush1.bf16.msra.mxu0 0
    %145 = vmatprep.subr.bf16.mxu0 0
    %146 = vmatpush1.bf16.msra.mxu0 0
    %147 = vmatprep.subr.bf16.mxu0 0
    %148 = vmatpush1.bf16.msra.mxu0 0
    %149 = vmatprep.subr.bf16.mxu0 0
    %150 = vmatpush1.bf16.msra.mxu0 0
    %151 = vmatprep.subr.bf16.mxu0 0
    %152 = vmatpush1.bf16.msra.mxu0 0
    %153 = vmatprep.subr.bf16.mxu0 0
    %154 = vmatpush1.bf16.msra.mxu0 0
    %155 = vmatprep.mubr.bf16.mxu0 0
    %156 = vmatmul.mubr.bf16.gmra.mrb[0].mxu0 %v73
    %v157 = vpop.f32.mrb[0].mxu0
    %v158 = vadd.f32 %v67, %v157
    %v159 = vpop.f32.mrb[0].mxu0
    %v160 = vpop.f32.mrb[0].mxu0
    %v161 = vadd.f32 %v67, %v160
    %v162 = vpop.f32.mrb[0].mxu0
    %163 = vdwg.mxu0
    %164 = vst [vmem:[#allocation7] sm:$0xff] %v158
    %165 = vst [vmem:[#allocation7 + $0x8] sm:$0xff] %v161
    // Predicated region
    $region22: #{tpu_custom_call.1} parent=1 // pred_check
      _
    $region23: #{tpu_custom_call.1} parent=1 // pred_check_branch
      %167 = sbr.rel (0) target = $region25
    $region24: #{tpu_custom_call.1} parent=1 // pred_region
      %s169 = ssub.s32 256, 256
      %170 = vsyncadd [#allocation4], %s169
      %s171 = sshll.u32 [#allocation7], 4
      %s172 = int_to_ptr.vmem [resolvable:$true] %s171
      %177 = dma.vmem_to_hbm [thread:$0]  %s172, 256, %s3, [#allocation4], 128, 128, 8
    $region25: #{tpu_custom_call.1} parent=1 // pred_fallthru
      _
    // Predicated region
    $region26: #{tpu_custom_call.1} parent=1 // pred_check
      _
    $region27: #{tpu_custom_call.1} parent=1 // pred_check_branch
      %179 = sbr.rel (0) target = $region29
    $region28: #{tpu_custom_call.1} parent=1 // pred_region
      %180 = dma.done [#allocation4], 256
    $region29: #{tpu_custom_call.1} parent=1 // pred_fallthru
      _
    %181 = vsyncpa [#allocation3], 1
    %182 = vsyncpa [#allocation6], 1
    %183 = vsyncpa [#allocation4], 1

</llo_original>
